<compile_context>
chip_gen: v6e
topology: v6e:2x2x1
jax: 0.10.0
libtpu: 0.0.40
codegen_flags: <defaults>
</compile_context>

<pallas_src>
import functools
import math

import jax
import jax.numpy as jnp
from jax.experimental import pallas as pl
from jax.experimental.pallas import tpu as pltpu


def _flatten_copy_kernel(x_ref, o_ref):
    # Pure data movement: copy one (block_rows, width) slab of the flattened
    # feature buffer.
    o_ref[...] = x_ref[...]


def _choose_slab(n_elems: int, itemsize: int, target_block_bytes: int):
    """Pick a lane/sublane-dense 2D view (rows, width) of the flat buffer.

    width is a multiple of 128 (lane-dense) and rows a multiple of 8 (full
    sublane occupancy).  Returns (width, rows, block_rows) or None if no such
    factorization exists (odd total sizes).
    """
    for width in (2048, 1024, 512, 256, 128):
        if n_elems % width == 0 and (n_elems // width) % 8 == 0:
            rows = n_elems // width
            # Rows per block: ~target_block_bytes worth, rounded to a multiple
            # of 8, clamped to the actual row count.
            block_rows = (target_block_bytes // (width * itemsize)) // 8 * 8
            block_rows = max(8, min(block_rows, rows))
            return width, rows, block_rows
    return None


@functools.partial(jax.jit, static_argnames=("target_block_bytes", "donate_input"))
def flatten_extractor(
    observations: jax.Array,
    *,
    target_block_bytes: int = 1 << 20,
    donate_input: bool = False,
) -> jax.Array:
    """Pallas implementation of FlattenExtractor.forward.

    observations: (B, C, H, W)  ->  returns (B, C*H*W), same dtype.

    donate_input=True aliases the kernel output onto the input buffer
    (input_output_aliases={0: 0}).  This only pays off when the caller donates
    the observation buffer; otherwise XLA inserts a defensive copy, so it is
    off by default.
    """
    B = observations.shape[0]
    F = math.prod(observations.shape[1:])
    N = B * F
    dtype = observations.dtype
    itemsize = jnp.dtype(dtype).itemsize
    aliases = {0: 0} if donate_input else {}

    slab = _choose_slab(N, itemsize, target_block_bytes)

    if slab is None:
        # TODO(synk): N not divisible by 8*128 — fall back to a single
        # full-array block (fine for small placeholder extractors; large odd
        # sizes would want a masked cdiv grid instead).
        x2d = observations.reshape(B, F)
        out = pl.pallas_call(
            _flatten_copy_kernel,
            out_shape=jax.ShapeDtypeStruct((B, F), dtype),
            in_specs=[pl.BlockSpec((B, F), lambda: (0, 0))],
            out_specs=pl.BlockSpec((B, F), lambda: (0, 0)),
            input_output_aliases=aliases,
        )(x2d)
        return out

    width, rows, block_rows = slab

    # Row-major re-view of the flat buffer: element order is identical to
    # torch.nn.Flatten on a contiguous NCHW tensor, so copying this slab and
    # re-viewing it as (B, F) is exact.
    x_slab = observations.reshape(rows, width)
    grid = (pl.cdiv(rows, block_rows),)

    out_slab = pl.pallas_call(
        _flatten_copy_kernel,
        out_shape=jax.ShapeDtypeStruct((rows, width), dtype),
        grid_spec=pltpu.PrefetchScalarGridSpec(
            num_scalar_prefetch=0,
            grid=grid,
            in_specs=[pl.BlockSpec((block_rows, width), lambda i: (i, 0))],
            out_specs=pl.BlockSpec((block_rows, width), lambda i: (i, 0)),
        ),
        compiler_params=pltpu.CompilerParams(
            dimension_semantics=("parallel",),
        ),
        input_output_aliases=aliases,
    )(x_slab)

    return out_slab.reshape(B, F)


if __name__ == "__main__":
    key = jax.random.PRNGKey(0)
    # Small observation space: (C, H, W) = (4, 16, 16), batch = 2.
    B, C, H, W = 2, 4, 16, 16
    x = jax.random.normal(key, (B, C, H, W), dtype=jnp.float32)

    out = flatten_extractor(x)
    out = jax.block_until_ready(out)

    # Reference: torch.nn.Flatten semantics == row-major reshape.
    ref = x.reshape(B, C * H * W)
    assert out.shape == (B, C * H * W), out.shape
    assert out.dtype == x.dtype, out.dtype
    assert bool(jnp.array_equal(out, ref)), "mismatch vs reference flatten"

    print("KERNEL_OK")
</pallas_src>

<mosaic_0001>
module attributes {stable_mosaic.version = 11 : i64} {
  func.func @_flatten_copy_kernel(%arg0: i32, %arg1: memref<8x256xf32, #tpu.memory_space<vmem>>, %arg2: memref<8x256xf32, #tpu.memory_space<vmem>>) attributes {dimension_semantics = [#tpu.dimension_semantics<parallel>], iteration_bounds = array<i64: 1>, scalar_prefetch = 0 : i64, scratch_operands = 0 : i64, tpu.core_type = #tpu.core_type<tc>, window_params = [{transform_indices = @transform_0, window_bounds = array<i64: 8, 256>}, {transform_indices = @transform_1, window_bounds = array<i64: 8, 256>}]} {
    %c0 = arith.constant 0 : index
    %c0_0 = arith.constant 0 : index
    %0 = vector.load %arg1[%c0, %c0_0] : memref<8x256xf32, #tpu.memory_space<vmem>>, vector<8x256xf32>
    %c0_1 = arith.constant 0 : index
    %c0_2 = arith.constant 0 : index
    %1 = vector.load %arg2[%c0_1, %c0_2] : memref<8x256xf32, #tpu.memory_space<vmem>>, vector<8x256xf32>
    tpu.vector_store %arg2[%c0_1, %c0_2], %0 {strides = array<i32>} : memref<8x256xf32, #tpu.memory_space<vmem>>, vector<8x256xf32>,
    return
  }
  func.func @transform_0(%arg0: i32) -> (i32, i32) {
    %c0_i32 = arith.constant 0 : i32
    %c0_i32_0 = arith.constant 0 : i32
    return %arg0, %c0_i32 : i32, i32
  }
  func.func @transform_1(%arg0: i32) -> (i32, i32) {
    %c0_i32 = arith.constant 0 : i32
    %c0_i32_0 = arith.constant 0 : i32
    return %arg0, %c0_i32 : i32, i32
  }
}

</mosaic_0001>

<llo_original>
// kernel: flatten_extractor.1
$region0: #{flatten_extractor.1}
  #allocation0 [shape = 'u32[]', space=smem, size = 0x4, offset = 0x4, fixed_abs, tag = 'smem constant byte address 0x4 - core index']
  #allocation1 [shape = 'u32[144,128]{1,0:T(1,128)}', space=vmem, size = 0x12000, scoped, tag = 'internal scratch']
  %s0 = inlined_call_operand.vmem [shape: f32[8,256], index: 0, kind: input, shape index: {}]
  %s1 = inlined_call_operand.vmem [shape: f32[8,256], index: 1, kind: output, shape index: {}]
  %s2 = sld [smem:[#allocation0]]
  $region14: #{flatten_extractor.1} parent=0
    _
  %s4 = ssub.s32 1, %s2
  %s5 = scalar_select 0, %s4, %s2
  // Predicated region
  $region2: #{flatten_extractor.1} parent=0 // pred_check
    _
  $region3: #{flatten_extractor.1} parent=0 // pred_check_branch
    %7 = sbr.rel (0) target = $region5
  $region4: #{flatten_extractor.1} parent=0 // pred_region
    _
  $region5: #{flatten_extractor.1} parent=0 // pred_fallthru
    _
  %v8 = vld [vmem:[%s0] sm:$0xff]
  %v9 = vld [vmem:[%s0 + $0x8] sm:$0xff]
  %10 = vst [vmem:[%s1] sm:$0xff] %v8
  %11 = vst [vmem:[%s1 + $0x8] sm:$0xff] %v9
  // Predicated region
  $region6: #{flatten_extractor.1} parent=0 // pred_check
    _
  $region7: #{flatten_extractor.1} parent=0 // pred_check_branch
    %13 = sbr.rel (0) target = $region9
  $region8: #{flatten_extractor.1} parent=0 // pred_region
    _
  $region9: #{flatten_extractor.1} parent=0 // pred_fallthru
    _
  // Predicated region
  $region10: #{flatten_extractor.1} parent=0 // pred_check
    _
  $region11: #{flatten_extractor.1} parent=0 // pred_check_branch
    %15 = sbr.rel (0) target = $region13
  $region12: #{flatten_extractor.1} parent=0 // pred_region
    _
  $region13: #{flatten_extractor.1} parent=0 // pred_fallthru
    _

</llo_original>
